<compile_context>
chip_gen: v6e
topology: v6e:2x2x1
jax: 0.10.0
libtpu: 0.0.40
codegen_flags: <defaults>
</compile_context>

<pallas_src>
import functools

import jax
import jax.numpy as jnp
from jax.experimental import pallas as pl
from jax.experimental.pallas import tpu as pltpu


def _rmsnorm_kernel(x_ref, w_ref, o_ref, *, eps, inv_hidden, exact_cast,
                    reduce_on_mxu):
    # Promote to f32 for the statistics (matches hidden_states.to(torch.float32)).
    x = x_ref[...].astype(jnp.float32)
    x2 = x * x
    if reduce_on_mxu:
        # Row reduction on the (otherwise idle) MXU: removes a VALU add/elem
        # and the XLU lane-reduce from the saturating slots (v7x bf16 path).
        ones = jnp.ones((x.shape[-1], 1), dtype=jnp.float32)
        ssq = jnp.dot(x2, ones, preferred_element_type=jnp.float32)
    else:
        ssq = jnp.sum(x2, axis=-1, keepdims=True)
    # sum(x^2) * (1/hidden) == mean(x^2); the 1/hidden constant is folded into
    # the rsqrt argument so no extra full-width divide/multiply is needed.
    inv = jax.lax.rsqrt(ssq * inv_hidden + eps)          # EUP rsqrt
    w = w_ref[...]
    if exact_cast:
        # Cast back to the input dtype before applying the weight
        # (matches `hidden_states.to(input_dtype)` in the torch module).
        y = (x * inv).astype(x_ref.dtype)
        o_ref[...] = (w * y).astype(o_ref.dtype)
    else:
        # Fast path: skip the down-cast / re-promote round trip (slight
        # numerical deviation from torch; opt-in).
        o_ref[...] = (x * inv * w.astype(jnp.float32)).astype(o_ref.dtype)


def _vmem_capacity_bytes():
    """Per-TensorCore VMEM capacity, defensively clamped."""
    cap = 64 * 1024 * 1024  # conservative fallback: smallest per-TC VMEM (v7x)
    try:
        cap = int(pltpu.get_tpu_info().vmem_capacity_bytes)
    except Exception:
        pass
    # Never assume more than 128 MiB per TensorCore.
    cap = min(cap, 128 * 1024 * 1024)
    # If this looks like a v7-class part, the per-TC VMEM is 64 MiB; clamp in
    # case vmem_capacity_bytes reported a per-chip number.
    try:
        kind = jax.devices()[0].device_kind.lower()
        if "v7" in kind:
            cap = min(cap, 64 * 1024 * 1024)
    except Exception:
        pass
    return cap


def _num_tensorcores():
    """Best-effort TensorCore count per device (1 on failure)."""
    try:
        d = jax.devices()[0]
        for attr in ("num_cores", "core_count"):
            v = getattr(d, attr, None)
            if v:
                return max(1, int(v))
    except Exception:
        pass
    return 1


def _round_up(x, m):
    return ((x + m - 1) // m) * m


def _select_row_tile(rows, hidden, in_itemsize, out_itemsize,
                     vmem_budget_bytes, num_cores=1):
    """Largest row tile whose VMEM footprint fits the budget.

    Footprint per row (bytes): double-buffered input block + double-buffered
    output block + ~2 live f32 temporaries per element (x.astype(f32) and the
    scaled product), all of width `hidden`.
    """
    # Sublane packing for the input dtype: f32 -> 8, bf16/f16 -> 16, int8/fp8 -> 32.
    packing = 8 * max(1, 4 // max(1, in_itemsize))
    f32_temp_bytes = 8  # ~2 f32 temporaries live per element (conservative)
    per_row_bytes = hidden * (2 * (in_itemsize + out_itemsize) + f32_temp_bytes)

    tile = max(vmem_budget_bytes // max(per_row_bytes, 1), packing)
    # No fixed row cap: the VMEM budget is the only ceiling, so small-hidden
    # shapes get multi-MiB blocks.  Never exceed the (packing-rounded) row count.
    tile = min(tile, _round_up(rows, packing))
    # Keep >= num_cores grid steps only on multi-TensorCore chips (megacore
    # sharding); on single-TC chips splitting just shrinks the tile for nothing.
    if num_cores > 1 and rows > packing * num_cores:
        tile = min(tile, pl.cdiv(rows, num_cores))
    tile = max((tile // packing) * packing, packing)
    return int(tile)


def zhinao_rmsnorm(hidden_states, weight, eps=1e-6, *, output_dtype=None,
                   row_tile=None, exact_cast=True, reduce_on_mxu=False):
    """RMSNorm over the last dim (ZhinaoRMSNorm forward).

    hidden_states: (..., hidden); weight: (hidden,) (nn.Parameter of ones).
    output_dtype: None -> follow torch promotion (weight.dtype x input dtype).
                  For bf16 inference, pass hidden_states.dtype to cut output
                  HBM traffic by ~1/3 (recommended on v5e especially).
    exact_cast:   True (default) reproduces torch's intermediate
                  `.to(input_dtype)` cast exactly; False skips the round trip
                  (fewer VALU ops/elem -- keeps v7x mem-bound on bf16 data).
    reduce_on_mxu: opt-in; compute the row reduction on the idle MXU.
    """
    orig_shape = hidden_states.shape
    hidden = orig_shape[-1]
    x2d = hidden_states.reshape(-1, hidden)
    rows = x2d.shape[0]

    out_dtype = (jnp.promote_types(weight.dtype, hidden_states.dtype)
                 if output_dtype is None else jnp.dtype(output_dtype))
    in_itemsize = jnp.dtype(hidden_states.dtype).itemsize
    out_itemsize = jnp.dtype(out_dtype).itemsize
    w_itemsize = jnp.dtype(weight.dtype).itemsize

    vmem_capacity = _vmem_capacity_bytes()
    # ~60% budget on 128 MiB parts (v5e/v6e), ~40% on 64 MiB parts (v7x).
    if vmem_capacity >= 96 * 1024 * 1024:
        vmem_budget = (vmem_capacity * 3) // 5
    else:
        vmem_budget = (vmem_capacity * 2) // 5

    if row_tile is None:
        row_tile = _select_row_tile(rows, hidden, in_itemsize, out_itemsize,
                                    vmem_budget, num_cores=_num_tensorcores())

    # Ragged last block: the grid covers the UNPADDED row count.  The per-row
    # reduction means stale VMEM contents in padded sublanes cannot contaminate
    # valid rows, and Pallas masks the out-of-bounds part of the writeback.
    grid_rows = pl.cdiv(rows, row_tile)

    w2d = weight.reshape(1, hidden)

    # Scoped VMEM limit: double-buffered in/out blocks + f32 promoted temps
    # (+8 B/elem) + weight block, with headroom, clamped below capacity.
    footprint = (2 * row_tile * hidden * (in_itemsize + out_itemsize)
                 + 8 * row_tile * hidden
                 + 2 * hidden * w_itemsize)
    vmem_limit = int(min(int(vmem_capacity * 0.9),
                         max(footprint + (8 << 20), 32 << 20)))

    kernel = functools.partial(_rmsnorm_kernel, eps=float(eps),
                               inv_hidden=1.0 / float(hidden),
                               exact_cast=exact_cast,
                               reduce_on_mxu=reduce_on_mxu)

    out2d = pl.pallas_call(
        kernel,
        out_shape=jax.ShapeDtypeStruct((rows, hidden), out_dtype),
        grid_spec=pltpu.PrefetchScalarGridSpec(
            num_scalar_prefetch=0,
            grid=(grid_rows,),
            in_specs=[
                pl.BlockSpec((row_tile, hidden), lambda i: (i, 0)),
                # Constant block index -> Pallas fetches the weight once and
                # skips the DMA on subsequent grid steps.
                pl.BlockSpec((1, hidden), lambda i: (0, 0)),
            ],
            out_specs=pl.BlockSpec((row_tile, hidden), lambda i: (i, 0)),
        ),
        compiler_params=pltpu.CompilerParams(
            dimension_semantics=("parallel",),
            vmem_limit_bytes=vmem_limit,
        ),
    )(x2d, w2d)

    return out2d.reshape(orig_shape)


def _reference_rmsnorm(hidden_states, weight, eps=1e-6):
    input_dtype = hidden_states.dtype
    h = hidden_states.astype(jnp.float32)
    variance = jnp.mean(h * h, axis=-1, keepdims=True)
    h = h * jax.lax.rsqrt(variance + eps)
    return weight * h.astype(input_dtype)


if __name__ == "__main__":
    key = jax.random.PRNGKey(0)

    # Test 1: f32 activations, small hidden (=32), matches the module spec shape.
    x_small = jax.random.normal(key, (2, 8, 32), dtype=jnp.float32)
    w_small = jnp.ones((32,), dtype=jnp.float32)  # nn.Parameter(torch.ones(...))
    out = jax.block_until_ready(zhinao_rmsnorm(x_small, w_small, eps=1e-6))
    ref = _reference_rmsnorm(x_small, w_small, eps=1e-6)
    assert out.shape == ref.shape and out.dtype == ref.dtype
    assert jnp.allclose(out, ref, atol=1e-5, rtol=1e-5)

    # Test 2: f32 activations, lane-width hidden (=128).
    batch, seq, hidden = 2, 8, 128
    weight = jnp.ones((hidden,), dtype=jnp.float32)
    x = jax.random.normal(jax.random.PRNGKey(1), (batch, seq, hidden),
                          dtype=jnp.float32)
    out = jax.block_until_ready(zhinao_rmsnorm(x, weight, eps=1e-6))
    ref = _reference_rmsnorm(x, weight, eps=1e-6)
    assert out.shape == ref.shape and out.dtype == ref.dtype
    assert jnp.allclose(out, ref, atol=1e-5, rtol=1e-5)

    # Test 3: bf16 activations (f32-promoted output, exact torch semantics).
    xb = jax.random.normal(jax.random.PRNGKey(2), (batch, seq, hidden),
                           dtype=jnp.bfloat16)
    outb = jax.block_until_ready(zhinao_rmsnorm(xb, weight, eps=1e-6))
    refb = _reference_rmsnorm(xb, weight, eps=1e-6)
    assert outb.shape == refb.shape and outb.dtype == refb.dtype
    assert jnp.allclose(outb, refb, atol=2e-2, rtol=2e-2)

    # Test 4: ragged last block (rows=15, forced row_tile=8 -> grid=2, last
    # block partially out of bounds) -- exercises the no-pad path.
    xo = jax.random.normal(jax.random.PRNGKey(3), (3, 5, hidden),
                           dtype=jnp.float32)
    outo = jax.block_until_ready(zhinao_rmsnorm(xo, weight, eps=1e-6,
                                                row_tile=8))
    refo = _reference_rmsnorm(xo, weight, eps=1e-6)
    assert outo.shape == refo.shape
    assert jnp.allclose(outo, refo, atol=1e-5, rtol=1e-5)

    # Test 5: bf16 in / bf16 out (reduced-HBM-traffic inference setting).
    outc = jax.block_until_ready(
        zhinao_rmsnorm(xb, weight, eps=1e-6, output_dtype=jnp.bfloat16))
    refc = _reference_rmsnorm(xb, weight, eps=1e-6).astype(jnp.bfloat16)
    assert outc.shape == refc.shape and outc.dtype == jnp.bfloat16
    assert jnp.allclose(outc.astype(jnp.float32), refc.astype(jnp.float32),
                        atol=3e-2, rtol=3e-2)

    print("KERNEL_OK")
</pallas_src>

<mosaic_0001>
module attributes {stable_mosaic.version = 11 : i64} {
  func.func @_rmsnorm_kernel(%arg0: i32, %arg1: memref<16x32xf32, #tpu.memory_space<vmem>>, %arg2: memref<1x32xf32, #tpu.memory_space<vmem>>, %arg3: memref<16x32xf32, #tpu.memory_space<vmem>>) attributes {dimension_semantics = [#tpu.dimension_semantics<parallel>], iteration_bounds = array<i64: 1>, scalar_prefetch = 0 : i64, scratch_operands = 0 : i64, tpu.core_type = #tpu.core_type<tc>, window_params = [{transform_indices = @transform_0, window_bounds = array<i64: 16, 32>}, {pipeline_mode = #tpu.pipeline_mode<synchronous>, transform_indices = @transform_1, window_bounds = array<i64: 1, 32>}, {transform_indices = @transform_2, window_bounds = array<i64: 16, 32>}]} {
    %c0 = arith.constant 0 : index
    %c0_0 = arith.constant 0 : index
    %0 = vector.load %arg1[%c0, %c0_0] : memref<16x32xf32, #tpu.memory_space<vmem>>, vector<16x32xf32>
    %1 = arith.mulf %0, %0 : vector<16x32xf32>
    %cst = arith.constant dense<0.000000e+00> : vector<16xf32>
    %2 = vector.multi_reduction <add>, %1, %cst [1] : vector<16x32xf32> to vector<16xf32>
    %3 = vector.shape_cast %2 : vector<16xf32> to vector<16x1xf32>
    %cst_1 = arith.constant 3.125000e-02 : f32
    %4 = vector.broadcast %cst_1 : f32 to vector<16x1xf32>
    %5 = arith.mulf %3, %4 : vector<16x1xf32>
    %cst_2 = arith.constant 9.99999997E-7 : f32
    %6 = vector.broadcast %cst_2 : f32 to vector<16x1xf32>
    %7 = arith.addf %5, %6 : vector<16x1xf32>
    %8 = math.rsqrt %7 : vector<16x1xf32>
    %c0_3 = arith.constant 0 : index
    %c0_4 = arith.constant 0 : index
    %9 = vector.load %arg2[%c0_3, %c0_4] : memref<1x32xf32, #tpu.memory_space<vmem>>, vector<1x32xf32>
    %10 = vector.broadcast %8 : vector<16x1xf32> to vector<16x32xf32>
    %11 = arith.mulf %0, %10 : vector<16x32xf32>
    %12 = vector.broadcast %9 : vector<1x32xf32> to vector<16x32xf32>
    %13 = arith.mulf %12, %11 : vector<16x32xf32>
    %c0_5 = arith.constant 0 : index
    %c0_6 = arith.constant 0 : index
    %14 = vector.load %arg3[%c0_5, %c0_6] : memref<16x32xf32, #tpu.memory_space<vmem>>, vector<16x32xf32>
    tpu.vector_store %arg3[%c0_5, %c0_6], %13 {strides = array<i32>} : memref<16x32xf32, #tpu.memory_space<vmem>>, vector<16x32xf32>,
    return
  }
  func.func @transform_0(%arg0: i32) -> (i32, i32) {
    %c0_i32 = arith.constant 0 : i32
    %c0_i32_0 = arith.constant 0 : i32
    return %arg0, %c0_i32 : i32, i32
  }
  func.func @transform_1(%arg0: i32) -> (i32, i32) {
    %c0_i32 = arith.constant 0 : i32
    %c0_i32_0 = arith.constant 0 : i32
    %c0_i32_1 = arith.constant 0 : i32
    return %c0_i32, %c0_i32_0 : i32, i32
  }
  func.func @transform_2(%arg0: i32) -> (i32, i32) {
    %c0_i32 = arith.constant 0 : i32
    %c0_i32_0 = arith.constant 0 : i32
    return %arg0, %c0_i32 : i32, i32
  }
}

</mosaic_0001>

<llo_original>
// kernel: tpu_custom_call.1
$region0: #{tpu_custom_call.1}
  #allocation0 [shape = 'u32[]', space=smem, size = 0x4, offset = 0x4, fixed_abs, tag = 'smem constant byte address 0x4 - core index']
  #allocation1 [shape = 'u32[144,128]{1,0:T(1,128)}', space=vmem, size = 0x12000, scoped, tag = 'internal scratch']
  %s0 = inlined_call_operand.hbm [shape: f32[16,32], index: 0, kind: input, shape index: {}]
  %s1 = inlined_call_operand.vmem [shape: f32[1,32], index: 1, kind: input, shape index: {}]
  %s2 = inlined_call_operand.hbm [shape: f32[16,32], index: 2, kind: output, shape index: {}]
  %s3 = sld [smem:[#allocation0]]
  $region22: #{tpu_custom_call.1} parent=0
    _
  %s5 = ssub.s32 1, %s3
  %s6 = scalar_select 0, %s5, %s3
  $region1: #{tpu_custom_call.1} parent=0
    #allocation2 [shape = 'u8[8192]{0}', space=vmem, size = 0x2000, scoped, tag = 'input window, operand 0, single buffered']
    #allocation3 [shape = 's32[1]{0}', space=sflag, size = 0x4, scoped, tag = 'scoped memory for tpu_custom_call.1']
    #allocation4 [shape = 's32[1]{0}', space=sflag, size = 0x4, scoped, tag = 'scoped memory for tpu_custom_call.1']
    #allocation5 [shape = 'u8[8192]{0}', space=vmem, size = 0x2000, scoped, tag = 'output window, operand 0, single buffered']
    %7 = vsyncpa [#allocation3], 0
    %8 = vsyncpa [#allocation4], 0
    // Predicated region
    $region2: #{tpu_custom_call.1} parent=1 // pred_check
      _
    $region3: #{tpu_custom_call.1} parent=1 // pred_check_branch
      %10 = sbr.rel (0) target = $region5
    $region4: #{tpu_custom_call.1} parent=1 // pred_region
      %s12 = ssub.s32 256, 256
      %13 = vsyncadd [#allocation3], %s12
      %s14 = sshll.u32 [#allocation2], 4
      %s15 = int_to_ptr.vmem [resolvable:$true] %s14
      %20 = dma.hbm_to_vmem [thread:$0]  %s0, 256, %s15, [#allocation3], 128, 128, 8
    $region5: #{tpu_custom_call.1} parent=1 // pred_fallthru
      _
    // Predicated region
    $region6: #{tpu_custom_call.1} parent=1 // pred_check
      _
    $region7: #{tpu_custom_call.1} parent=1 // pred_check_branch
      %22 = sbr.rel (0) target = $region9
    $region8: #{tpu_custom_call.1} parent=1 // pred_region
      _
    $region9: #{tpu_custom_call.1} parent=1 // pred_fallthru
      _
    // Predicated region
    $region10: #{tpu_custom_call.1} parent=1 // pred_check
      _
    $region11: #{tpu_custom_call.1} parent=1 // pred_check_branch
      %24 = sbr.rel (0) target = $region13
    $region12: #{tpu_custom_call.1} parent=1 // pred_region
      %25 = dma.done [#allocation3], 256
    $region13: #{tpu_custom_call.1} parent=1 // pred_fallthru
      _
    %v26 = vld [vmem:[#allocation2] sm:$0xff]
    %v27 = vld [vmem:[#allocation2 + $0x8] sm:$0xff]
    %v28 = vmul.f32 %v26, %v26
    %v29 = vmul.f32 %v27, %v27
    %vm30 = vcmask 261120
    %v31 = vsel %vm30, %v28, 0.0
    %32 = vadd.xlane.f32.xlu0 %v31
    %v33 = vpop.xlane.xlu0 %32
    %v34 = vsel %vm30, %v29, 0.0
    %35 = vadd.xlane.f32.xlu0 %v34
    %v36 = vpop.xlane.xlu0 %35
    %v37 = vmul.f32 %v33, 0.03125
    %v38 = vmul.f32 %v36, 0.03125
    %v39 = vadd.f32 %v37, 1e-06
    %v40 = vadd.f32 %v38, 1e-06
    %v41 = vrsqrt.pop %v39
    %v42 = vrsqrt.pop %v40
    %v43 = vld [vmem:[%s1] sm:$0x1]
    %v44 = vmul.f32 %v26, %v41
    %v45 = vmul.f32 %v27, %v42
    %v47 = vlaneseq
    %v48 = vshrl.u32 %v47, 7
    %v49 = vsub.s32 0, %v48
    %v50 = vrot.slane %v43, %v49
    %v52 = vmul.f32 %v50, %v44
    %v53 = vmul.f32 %v50, %v45
    %54 = vst.msk [vmem:[#allocation5] sm:$0xff] %vm30, %v52
    %55 = vst.msk [vmem:[#allocation5 + $0x8] sm:$0xff] %vm30, %v53
    // Predicated region
    $region14: #{tpu_custom_call.1} parent=1 // pred_check
      _
    $region15: #{tpu_custom_call.1} parent=1 // pred_check_branch
      %57 = sbr.rel (0) target = $region17
    $region16: #{tpu_custom_call.1} parent=1 // pred_region
      %s59 = ssub.s32 256, 256
      %60 = vsyncadd [#allocation4], %s59
      %s61 = sshll.u32 [#allocation5], 4
      %s62 = int_to_ptr.vmem [resolvable:$true] %s61
      %67 = dma.vmem_to_hbm [thread:$0]  %s62, 256, %s2, [#allocation4], 128, 128, 8
    $region17: #{tpu_custom_call.1} parent=1 // pred_fallthru
      _
    // Predicated region
    $region18: #{tpu_custom_call.1} parent=1 // pred_check
      _
    $region19: #{tpu_custom_call.1} parent=1 // pred_check_branch
      %69 = sbr.rel (0) target = $region21
    $region20: #{tpu_custom_call.1} parent=1 // pred_region
      %70 = dma.done [#allocation4], 256
    $region21: #{tpu_custom_call.1} parent=1 // pred_fallthru
      _
    %71 = vsyncpa [#allocation3], 1
    %72 = vsyncpa [#allocation4], 1

</llo_original>
